<compile_context>
chip_gen: v5e
topology: v5e:2x2
jax: 0.10.0
libtpu: 0.0.40
codegen_flags: <defaults>
</compile_context>

<pallas_src>
import functools

import jax
import jax.numpy as jnp
from jax.experimental import pallas as pl
from jax.experimental.pallas import tpu as pltpu

_EPS = 1e-5
_ROW_ALIGN = 16          # sublane-tile alignment of packed parameter rows


def _round_up(x, m):
    return (x + m - 1) // m * m


def _layer_dims(input_node):
    # (C_in, C_out) per Linear layer, matching the PyTorch module.
    return [(input_node, 32), (32, 16), (16, 16), (16, 4), (4, 1)]


def _row_layout(dims):
    """Row offset + padded row count per layer inside the packed slabs."""
    offs, pads, off = [], [], 0
    for _, c_out in dims:
        pad = _round_up(c_out, _ROW_ALIGN)
        offs.append(off)
        pads.append(pad)
        off += pad
    return offs, pads, off          # `off` == total packed rows


def _make_kernel(dims, row_offs, row_pads, n_rows):
    n_layers = len(dims)

    def kernel(x_ref, w_ref, v_ref, o_ref):
        # x_ref: [N, D_in] f32 (natural layout, batch on sublanes).
        # w_ref: [n_rows, 128] f32; layer li occupies rows
        #        row_offs[li] : row_offs[li]+row_pads[li], cols 0:K(li).
        # v_ref: [3*n_rows, 1] f32; bias rows [0,R), gamma [R,2R), beta [2R,3R).
        # o_ref: [1, N] f32 (lane-dense output slab).
        h = None
        for li, (c_in, c_out) in enumerate(dims):
            r0, rows = row_offs[li], row_pads[li]
            kdim = c_in if li == 0 else row_pads[li - 1]
            w = w_ref[r0:r0 + rows, 0:kdim]                       # [rows, kdim]
            b = v_ref[r0:r0 + rows, :]                            # [rows, 1]
            if li == 0:
                # Contract x's last dim directly: [rows,K] x [N,K] -> [rows,N].
                h = jax.lax.dot_general(
                    w, x_ref[...],
                    dimension_numbers=(((1,), (1,)), ((), ())),
                    preferred_element_type=jnp.float32) + b
            else:
                h = jnp.dot(w, h, preferred_element_type=jnp.float32) + b
            if li < n_layers - 1:
                h = jnp.maximum(h, 0.0)                           # ReLU
                gamma = v_ref[n_rows + r0:n_rows + r0 + rows, :]
                beta = v_ref[2 * n_rows + r0:2 * n_rows + r0 + rows, :]
                # Training-mode BatchNorm1d over the batch (lane) axis.
                mean = jnp.mean(h, axis=1, keepdims=True)         # [rows, 1]
                ex2 = jnp.mean(h * h, axis=1, keepdims=True)
                # Clamp: E[h^2]-mean^2 can dip below 0 from f32 cancellation.
                var = jnp.maximum(ex2 - mean * mean, 0.0)
                scale = gamma * jax.lax.rsqrt(var + _EPS)
                shift = beta - mean * scale
                h = h * scale + shift
                # TODO(synk): for very large N, compute the stats in lane chunks
                # to avoid keeping the full h*h f32 temporary live per layer.
            else:
                z = h[0:1, :]                                     # real output row
                # Sigmoid: exp + approximate reciprocal, both on the EUP.
                o_ref[...] = pl.reciprocal(
                    1.0 + jnp.exp(-z), approx=True).astype(o_ref.dtype)

    return kernel


@functools.partial(jax.jit, static_argnames=("input_node",))
def mlp_forward(x, w_slab, v_slab, *, input_node):
    """x: [N, D_in] f32; returns [N, 1] f32 (sigmoid probabilities)."""
    dims = _layer_dims(input_node)
    row_offs, row_pads, n_rows = _row_layout(dims)
    kernel = _make_kernel(dims, row_offs, row_pads, n_rows)
    n = x.shape[0]
    # Rough resident-VMEM estimate: x + widest f32 activation + stats temp,
    # clamped to a range that is safe on v5e/v6e/v7x default/physical limits.
    per_n = 4 * input_node + 3 * 4 * max(row_pads)
    vmem_limit = int(min(max(per_n * n + (2 << 20), 16 << 20), 48 << 20))
    vmem = pl.BlockSpec(memory_space=pltpu.MemorySpace.VMEM)
    out = pl.pallas_call(
        kernel,
        out_shape=jax.ShapeDtypeStruct((1, n), jnp.float32),     # lane-dense
        in_specs=[vmem, vmem, vmem],
        out_specs=vmem,
        compiler_params=pltpu.CompilerParams(vmem_limit_bytes=vmem_limit),
    )(x.astype(jnp.float32), w_slab, v_slab)
    return out.reshape(n, 1)        # [1,N] -> [N,1] is a free reshape


def pack_params(params, input_node):
    """Pack the 18 per-layer tensors into one weight slab + one vector slab."""
    dims = _layer_dims(input_node)
    row_offs, row_pads, n_rows = _row_layout(dims)
    w_cols = _round_up(max(c_in for c_in, _ in dims), 128)
    w_slab = jnp.zeros((n_rows, w_cols), jnp.float32)
    v_slab = jnp.zeros((3 * n_rows, 1), jnp.float32)
    idx = 0
    for li, (c_in, c_out) in enumerate(dims):
        w, b = params[idx], params[idx + 1]        # w: [c_out, c_in], b: [c_out]
        idx += 2
        r0 = row_offs[li]
        w_slab = w_slab.at[r0:r0 + c_out, 0:c_in].set(w)
        v_slab = v_slab.at[r0:r0 + c_out, 0].set(b)
        if li < len(dims) - 1:
            g, be = params[idx], params[idx + 1]
            idx += 2
            v_slab = v_slab.at[n_rows + r0:n_rows + r0 + c_out, 0].set(g)
            v_slab = v_slab.at[2 * n_rows + r0:2 * n_rows + r0 + c_out, 0].set(be)
    return w_slab, v_slab


def init_params(key, input_node):
    """Deterministic init mimicking the PyTorch layer shapes (w as [dout, din])."""
    params = []
    dims = _layer_dims(input_node)
    for li, (din, dout) in enumerate(dims):
        key, kw, kb = jax.random.split(key, 3)
        bound = 1.0 / (din ** 0.5)
        w = jax.random.uniform(kw, (dout, din), jnp.float32, -bound, bound)
        b = jax.random.uniform(kb, (dout,), jnp.float32, -bound, bound)
        params += [w, b]
        if li < len(dims) - 1:  # BatchNorm after first 4 linears: gamma=1, beta=0
            params += [jnp.ones((dout,), jnp.float32), jnp.zeros((dout,), jnp.float32)]
    return params


def reference_forward(x, params):
    """Pure-JAX f32 reference with PyTorch training-mode BatchNorm1d semantics."""
    h = x
    idx = 0
    for li in range(5):
        w, b = params[idx], params[idx + 1]
        idx += 2
        h = h @ w.T + b
        if li < 4:
            g, be = params[idx], params[idx + 1]
            idx += 2
            h = jnp.maximum(h, 0.0)
            mean = jnp.mean(h, axis=0, keepdims=True)
            var = jnp.mean((h - mean) ** 2, axis=0, keepdims=True)   # biased
            h = g * (h - mean) * jax.lax.rsqrt(var + _EPS) + be
    return 1.0 / (1.0 + jnp.exp(-h))


if __name__ == "__main__":
    INPUT_NODE = 16
    BATCH = 8

    key = jax.random.PRNGKey(0)
    kx, kp = jax.random.split(key)
    x = jax.random.normal(kx, (BATCH, INPUT_NODE), jnp.float32)
    params = init_params(kp, INPUT_NODE)
    w_slab, v_slab = pack_params(params, INPUT_NODE)

    out = mlp_forward(x, w_slab, v_slab, input_node=INPUT_NODE)
    out = jax.block_until_ready(out)

    ref = reference_forward(x, params)
    assert out.shape == (BATCH, 1), out.shape
    # Tolerance covers the approximate EUP reciprocal in the final sigmoid.
    assert jnp.allclose(out, ref, atol=3e-3, rtol=3e-3), (out, ref)

    print("KERNEL_OK")
</pallas_src>

<mosaic_0001>
module attributes {stable_mosaic.version = 11 : i64} {
  func.func @kernel(%arg0: memref<8x16xf32, #tpu.memory_space<vmem>>, %arg1: memref<96x128xf32, #tpu.memory_space<vmem>>, %arg2: memref<288x1xf32, #tpu.memory_space<vmem>>, %arg3: memref<1x8xf32, #tpu.memory_space<vmem>>) attributes {dimension_semantics = [], scalar_prefetch = 0 : i64, scratch_operands = 0 : i64, tpu.core_type = #tpu.core_type<tc>} {
    %c0 = arith.constant 0 : index
    %c0_0 = arith.constant 0 : index
    %0 = vector.load %arg1[%c0, %c0_0] : memref<96x128xf32, #tpu.memory_space<vmem>>, vector<32x16xf32>
    %c0_1 = arith.constant 0 : index
    %c0_2 = arith.constant 0 : index
    %1 = vector.load %arg2[%c0_1, %c0_2] : memref<288x1xf32, #tpu.memory_space<vmem>>, vector<32x1xf32>
    %c0_3 = arith.constant 0 : index
    %c0_4 = arith.constant 0 : index
    %2 = vector.load %arg0[%c0_3, %c0_4] : memref<8x16xf32, #tpu.memory_space<vmem>>, vector<8x16xf32>
    %cst = arith.constant dense<0.000000e+00> : vector<32x8xf32>
    %3 = tpu.matmul %0, %2, %cst {dimension_numbers = #tpu.dot_dimension_numbers<[1], [1], [0], [0], [0, 0, 1, 0], [], []>} : vector<32x16xf32>, vector<8x16xf32>, vector<32x8xf32> -> vector<32x8xf32>
    %4 = vector.broadcast %1 : vector<32x1xf32> to vector<32x8xf32>
    %5 = arith.addf %3, %4 : vector<32x8xf32>
    %cst_5 = arith.constant 0.000000e+00 : f32
    %6 = vector.broadcast %cst_5 : f32 to vector<32x8xf32>
    %7 = arith.maximumf %5, %6 : vector<32x8xf32>
    %c96 = arith.constant 96 : index
    %c0_6 = arith.constant 0 : index
    %8 = vector.load %arg2[%c96, %c0_6] : memref<288x1xf32, #tpu.memory_space<vmem>>, vector<32x1xf32>
    %c192 = arith.constant 192 : index
    %c0_7 = arith.constant 0 : index
    %9 = vector.load %arg2[%c192, %c0_7] : memref<288x1xf32, #tpu.memory_space<vmem>>, vector<32x1xf32>
    %cst_8 = arith.constant dense<0.000000e+00> : vector<32xf32>
    %10 = vector.multi_reduction <add>, %7, %cst_8 [1] : vector<32x8xf32> to vector<32xf32>
    %11 = vector.shape_cast %10 : vector<32xf32> to vector<32x1xf32>
    %cst_9 = arith.constant 8.000000e+00 : f32
    %12 = vector.broadcast %cst_9 : f32 to vector<32x1xf32>
    %13 = arith.divf %11, %12 : vector<32x1xf32>
    %14 = arith.mulf %7, %7 : vector<32x8xf32>
    %cst_10 = arith.constant dense<0.000000e+00> : vector<32xf32>
    %15 = vector.multi_reduction <add>, %14, %cst_10 [1] : vector<32x8xf32> to vector<32xf32>
    %16 = vector.shape_cast %15 : vector<32xf32> to vector<32x1xf32>
    %cst_11 = arith.constant 8.000000e+00 : f32
    %17 = vector.broadcast %cst_11 : f32 to vector<32x1xf32>
    %18 = arith.divf %16, %17 : vector<32x1xf32>
    %19 = arith.mulf %13, %13 : vector<32x1xf32>
    %20 = arith.subf %18, %19 : vector<32x1xf32>
    %cst_12 = arith.constant 0.000000e+00 : f32
    %21 = vector.broadcast %cst_12 : f32 to vector<32x1xf32>
    %22 = arith.maximumf %20, %21 : vector<32x1xf32>
    %cst_13 = arith.constant 9.99999974E-6 : f32
    %23 = vector.broadcast %cst_13 : f32 to vector<32x1xf32>
    %24 = arith.addf %22, %23 : vector<32x1xf32>
    %25 = math.rsqrt %24 : vector<32x1xf32>
    %26 = arith.mulf %8, %25 : vector<32x1xf32>
    %27 = arith.mulf %13, %26 : vector<32x1xf32>
    %28 = arith.subf %9, %27 : vector<32x1xf32>
    %29 = vector.broadcast %26 : vector<32x1xf32> to vector<32x8xf32>
    %30 = arith.mulf %7, %29 : vector<32x8xf32>
    %31 = vector.broadcast %28 : vector<32x1xf32> to vector<32x8xf32>
    %32 = arith.addf %30, %31 : vector<32x8xf32>
    %c32 = arith.constant 32 : index
    %c0_14 = arith.constant 0 : index
    %33 = vector.load %arg1[%c32, %c0_14] : memref<96x128xf32, #tpu.memory_space<vmem>>, vector<16x32xf32>
    %c32_15 = arith.constant 32 : index
    %c0_16 = arith.constant 0 : index
    %34 = vector.load %arg2[%c32_15, %c0_16] : memref<288x1xf32, #tpu.memory_space<vmem>>, vector<16x1xf32>
    %cst_17 = arith.constant dense<0.000000e+00> : vector<16x8xf32>
    %35 = tpu.matmul %33, %32, %cst_17 {dimension_numbers = #tpu.dot_dimension_numbers<[1], [0], [0], [1], [0, 0, 1, 1], [], []>} : vector<16x32xf32>, vector<32x8xf32>, vector<16x8xf32> -> vector<16x8xf32>
    %36 = vector.broadcast %34 : vector<16x1xf32> to vector<16x8xf32>
    %37 = arith.addf %35, %36 : vector<16x8xf32>
    %cst_18 = arith.constant 0.000000e+00 : f32
    %38 = vector.broadcast %cst_18 : f32 to vector<16x8xf32>
    %39 = arith.maximumf %37, %38 : vector<16x8xf32>
    %c128 = arith.constant 128 : index
    %c0_19 = arith.constant 0 : index
    %40 = vector.load %arg2[%c128, %c0_19] : memref<288x1xf32, #tpu.memory_space<vmem>>, vector<16x1xf32>
    %c224 = arith.constant 224 : index
    %c0_20 = arith.constant 0 : index
    %41 = vector.load %arg2[%c224, %c0_20] : memref<288x1xf32, #tpu.memory_space<vmem>>, vector<16x1xf32>
    %cst_21 = arith.constant dense<0.000000e+00> : vector<16xf32>
    %42 = vector.multi_reduction <add>, %39, %cst_21 [1] : vector<16x8xf32> to vector<16xf32>
    %43 = vector.shape_cast %42 : vector<16xf32> to vector<16x1xf32>
    %cst_22 = arith.constant 8.000000e+00 : f32
    %44 = vector.broadcast %cst_22 : f32 to vector<16x1xf32>
    %45 = arith.divf %43, %44 : vector<16x1xf32>
    %46 = arith.mulf %39, %39 : vector<16x8xf32>
    %cst_23 = arith.constant dense<0.000000e+00> : vector<16xf32>
    %47 = vector.multi_reduction <add>, %46, %cst_23 [1] : vector<16x8xf32> to vector<16xf32>
    %48 = vector.shape_cast %47 : vector<16xf32> to vector<16x1xf32>
    %cst_24 = arith.constant 8.000000e+00 : f32
    %49 = vector.broadcast %cst_24 : f32 to vector<16x1xf32>
    %50 = arith.divf %48, %49 : vector<16x1xf32>
    %51 = arith.mulf %45, %45 : vector<16x1xf32>
    %52 = arith.subf %50, %51 : vector<16x1xf32>
    %cst_25 = arith.constant 0.000000e+00 : f32
    %53 = vector.broadcast %cst_25 : f32 to vector<16x1xf32>
    %54 = arith.maximumf %52, %53 : vector<16x1xf32>
    %cst_26 = arith.constant 9.99999974E-6 : f32
    %55 = vector.broadcast %cst_26 : f32 to vector<16x1xf32>
    %56 = arith.addf %54, %55 : vector<16x1xf32>
    %57 = math.rsqrt %56 : vector<16x1xf32>
    %58 = arith.mulf %40, %57 : vector<16x1xf32>
    %59 = arith.mulf %45, %58 : vector<16x1xf32>
    %60 = arith.subf %41, %59 : vector<16x1xf32>
    %61 = vector.broadcast %58 : vector<16x1xf32> to vector<16x8xf32>
    %62 = arith.mulf %39, %61 : vector<16x8xf32>
    %63 = vector.broadcast %60 : vector<16x1xf32> to vector<16x8xf32>
    %64 = arith.addf %62, %63 : vector<16x8xf32>
    %c48 = arith.constant 48 : index
    %c0_27 = arith.constant 0 : index
    %65 = vector.load %arg1[%c48, %c0_27] : memref<96x128xf32, #tpu.memory_space<vmem>>, vector<16x16xf32>
    %c48_28 = arith.constant 48 : index
    %c0_29 = arith.constant 0 : index
    %66 = vector.load %arg2[%c48_28, %c0_29] : memref<288x1xf32, #tpu.memory_space<vmem>>, vector<16x1xf32>
    %cst_30 = arith.constant dense<0.000000e+00> : vector<16x8xf32>
    %67 = tpu.matmul %65, %64, %cst_30 {dimension_numbers = #tpu.dot_dimension_numbers<[1], [0], [0], [1], [0, 0, 1, 1], [], []>} : vector<16x16xf32>, vector<16x8xf32>, vector<16x8xf32> -> vector<16x8xf32>
    %68 = vector.broadcast %66 : vector<16x1xf32> to vector<16x8xf32>
    %69 = arith.addf %67, %68 : vector<16x8xf32>
    %cst_31 = arith.constant 0.000000e+00 : f32
    %70 = vector.broadcast %cst_31 : f32 to vector<16x8xf32>
    %71 = arith.maximumf %69, %70 : vector<16x8xf32>
    %c144 = arith.constant 144 : index
    %c0_32 = arith.constant 0 : index
    %72 = vector.load %arg2[%c144, %c0_32] : memref<288x1xf32, #tpu.memory_space<vmem>>, vector<16x1xf32>
    %c240 = arith.constant 240 : index
    %c0_33 = arith.constant 0 : index
    %73 = vector.load %arg2[%c240, %c0_33] : memref<288x1xf32, #tpu.memory_space<vmem>>, vector<16x1xf32>
    %cst_34 = arith.constant dense<0.000000e+00> : vector<16xf32>
    %74 = vector.multi_reduction <add>, %71, %cst_34 [1] : vector<16x8xf32> to vector<16xf32>
    %75 = vector.shape_cast %74 : vector<16xf32> to vector<16x1xf32>
    %cst_35 = arith.constant 8.000000e+00 : f32
    %76 = vector.broadcast %cst_35 : f32 to vector<16x1xf32>
    %77 = arith.divf %75, %76 : vector<16x1xf32>
    %78 = arith.mulf %71, %71 : vector<16x8xf32>
    %cst_36 = arith.constant dense<0.000000e+00> : vector<16xf32>
    %79 = vector.multi_reduction <add>, %78, %cst_36 [1] : vector<16x8xf32> to vector<16xf32>
    %80 = vector.shape_cast %79 : vector<16xf32> to vector<16x1xf32>
    %cst_37 = arith.constant 8.000000e+00 : f32
    %81 = vector.broadcast %cst_37 : f32 to vector<16x1xf32>
    %82 = arith.divf %80, %81 : vector<16x1xf32>
    %83 = arith.mulf %77, %77 : vector<16x1xf32>
    %84 = arith.subf %82, %83 : vector<16x1xf32>
    %cst_38 = arith.constant 0.000000e+00 : f32
    %85 = vector.broadcast %cst_38 : f32 to vector<16x1xf32>
    %86 = arith.maximumf %84, %85 : vector<16x1xf32>
    %cst_39 = arith.constant 9.99999974E-6 : f32
    %87 = vector.broadcast %cst_39 : f32 to vector<16x1xf32>
    %88 = arith.addf %86, %87 : vector<16x1xf32>
    %89 = math.rsqrt %88 : vector<16x1xf32>
    %90 = arith.mulf %72, %89 : vector<16x1xf32>
    %91 = arith.mulf %77, %90 : vector<16x1xf32>
    %92 = arith.subf %73, %91 : vector<16x1xf32>
    %93 = vector.broadcast %90 : vector<16x1xf32> to vector<16x8xf32>
    %94 = arith.mulf %71, %93 : vector<16x8xf32>
    %95 = vector.broadcast %92 : vector<16x1xf32> to vector<16x8xf32>
    %96 = arith.addf %94, %95 : vector<16x8xf32>
    %c64 = arith.constant 64 : index
    %c0_40 = arith.constant 0 : index
    %97 = vector.load %arg1[%c64, %c0_40] : memref<96x128xf32, #tpu.memory_space<vmem>>, vector<16x16xf32>
    %c64_41 = arith.constant 64 : index
    %c0_42 = arith.constant 0 : index
    %98 = vector.load %arg2[%c64_41, %c0_42] : memref<288x1xf32, #tpu.memory_space<vmem>>, vector<16x1xf32>
    %cst_43 = arith.constant dense<0.000000e+00> : vector<16x8xf32>
    %99 = tpu.matmul %97, %96, %cst_43 {dimension_numbers = #tpu.dot_dimension_numbers<[1], [0], [0], [1], [0, 0, 1, 1], [], []>} : vector<16x16xf32>, vector<16x8xf32>, vector<16x8xf32> -> vector<16x8xf32>
    %100 = vector.broadcast %98 : vector<16x1xf32> to vector<16x8xf32>
    %101 = arith.addf %99, %100 : vector<16x8xf32>
    %cst_44 = arith.constant 0.000000e+00 : f32
    %102 = vector.broadcast %cst_44 : f32 to vector<16x8xf32>
    %103 = arith.maximumf %101, %102 : vector<16x8xf32>
    %c160 = arith.constant 160 : index
    %c0_45 = arith.constant 0 : index
    %104 = vector.load %arg2[%c160, %c0_45] : memref<288x1xf32, #tpu.memory_space<vmem>>, vector<16x1xf32>
    %c256 = arith.constant 256 : index
    %c0_46 = arith.constant 0 : index
    %105 = vector.load %arg2[%c256, %c0_46] : memref<288x1xf32, #tpu.memory_space<vmem>>, vector<16x1xf32>
    %cst_47 = arith.constant dense<0.000000e+00> : vector<16xf32>
    %106 = vector.multi_reduction <add>, %103, %cst_47 [1] : vector<16x8xf32> to vector<16xf32>
    %107 = vector.shape_cast %106 : vector<16xf32> to vector<16x1xf32>
    %cst_48 = arith.constant 8.000000e+00 : f32
    %108 = vector.broadcast %cst_48 : f32 to vector<16x1xf32>
    %109 = arith.divf %107, %108 : vector<16x1xf32>
    %110 = arith.mulf %103, %103 : vector<16x8xf32>
    %cst_49 = arith.constant dense<0.000000e+00> : vector<16xf32>
    %111 = vector.multi_reduction <add>, %110, %cst_49 [1] : vector<16x8xf32> to vector<16xf32>
    %112 = vector.shape_cast %111 : vector<16xf32> to vector<16x1xf32>
    %cst_50 = arith.constant 8.000000e+00 : f32
    %113 = vector.broadcast %cst_50 : f32 to vector<16x1xf32>
    %114 = arith.divf %112, %113 : vector<16x1xf32>
    %115 = arith.mulf %109, %109 : vector<16x1xf32>
    %116 = arith.subf %114, %115 : vector<16x1xf32>
    %cst_51 = arith.constant 0.000000e+00 : f32
    %117 = vector.broadcast %cst_51 : f32 to vector<16x1xf32>
    %118 = arith.maximumf %116, %117 : vector<16x1xf32>
    %cst_52 = arith.constant 9.99999974E-6 : f32
    %119 = vector.broadcast %cst_52 : f32 to vector<16x1xf32>
    %120 = arith.addf %118, %119 : vector<16x1xf32>
    %121 = math.rsqrt %120 : vector<16x1xf32>
    %122 = arith.mulf %104, %121 : vector<16x1xf32>
    %123 = arith.mulf %109, %122 : vector<16x1xf32>
    %124 = arith.subf %105, %123 : vector<16x1xf32>
    %125 = vector.broadcast %122 : vector<16x1xf32> to vector<16x8xf32>
    %126 = arith.mulf %103, %125 : vector<16x8xf32>
    %127 = vector.broadcast %124 : vector<16x1xf32> to vector<16x8xf32>
    %128 = arith.addf %126, %127 : vector<16x8xf32>
    %c80 = arith.constant 80 : index
    %c0_53 = arith.constant 0 : index
    %129 = vector.load %arg1[%c80, %c0_53] : memref<96x128xf32, #tpu.memory_space<vmem>>, vector<16x16xf32>
    %c80_54 = arith.constant 80 : index
    %c0_55 = arith.constant 0 : index
    %130 = vector.load %arg2[%c80_54, %c0_55] : memref<288x1xf32, #tpu.memory_space<vmem>>, vector<16x1xf32>
    %cst_56 = arith.constant dense<0.000000e+00> : vector<16x8xf32>
    %131 = tpu.matmul %129, %128, %cst_56 {dimension_numbers = #tpu.dot_dimension_numbers<[1], [0], [0], [1], [0, 0, 1, 1], [], []>} : vector<16x16xf32>, vector<16x8xf32>, vector<16x8xf32> -> vector<16x8xf32>
    %132 = vector.broadcast %130 : vector<16x1xf32> to vector<16x8xf32>
    %133 = arith.addf %131, %132 : vector<16x8xf32>
    %134 = vector.extract_strided_slice %133 {offsets = [0, 0], sizes = [1, 8], strides = [1, 1]} : vector<16x8xf32> to vector<1x8xf32>
    %cst_57 = arith.constant 0.000000e+00 : f32
    %135 = vector.broadcast %cst_57 : f32 to vector<1x8xf32>
    %136 = arith.subf %135, %134 : vector<1x8xf32>
    %137 = math.exp %136 : vector<1x8xf32>
    %cst_58 = arith.constant 1.000000e+00 : f32
    %138 = vector.broadcast %cst_58 : f32 to vector<1x8xf32>
    %139 = arith.addf %138, %137 : vector<1x8xf32>
    %140 = tpu.reciprocal %139 {approx = true} : vector<1x8xf32> -> vector<1x8xf32>
    %c0_59 = arith.constant 0 : index
    %c0_60 = arith.constant 0 : index
    %141 = vector.load %arg3[%c0_59, %c0_60] : memref<1x8xf32, #tpu.memory_space<vmem>>, vector<1x8xf32>
    tpu.vector_store %arg3[%c0_59, %c0_60], %140 {strides = array<i32>} : memref<1x8xf32, #tpu.memory_space<vmem>>, vector<1x8xf32>,
    return
  }
}

</mosaic_0001>

<llo_original>
// kernel: mlp_forward.1
$region0: #{mlp_forward.1}
  #allocation0 [shape = 'u32[]', space=smem, size = 0x4, offset = 0x4, fixed_abs, tag = 'smem constant byte address 0x4 - core index']
  #allocation1 [shape = 'u32[72,128]{1,0:T(1,128)}', space=vmem, size = 0x9000, scoped, tag = 'internal scratch']
  %s0 = inlined_call_operand.vmem [shape: f32[8,16], index: 0, kind: input, shape index: {}]
  %s1 = inlined_call_operand.vmem [shape: f32[96,128], index: 1, kind: input, shape index: {}]
  %s2 = inlined_call_operand.vmem [shape: f32[288,1], index: 2, kind: input, shape index: {}]
  %s3 = inlined_call_operand.hbm [shape: f32[1,8], index: 3, kind: output, shape index: {}]
  %s4 = sld [smem:[#allocation0]]
  $region22: #{mlp_forward.1} parent=0
    _
  %s6 = ssub.s32 1, %s4
  %s7 = scalar_select 0, %s6, %s4
  $region1: #{mlp_forward.1} parent=0
    #allocation2 [shape = 'u8[512]{0}', space=vmem, size = 0x400, scoped, tag = 'output window, operand 0, single buffered']
    #allocation3 [shape = 's32[1]{0}', space=sflag, size = 0x4, scoped, tag = 'scoped memory for mlp_forward.1']
    %8 = vsyncpa [#allocation3], 0
    // Predicated region
    $region2: #{mlp_forward.1} parent=1 // pred_check
      _
    $region3: #{mlp_forward.1} parent=1 // pred_check_branch
      %10 = sbr.rel (0) target = $region5
    $region4: #{mlp_forward.1} parent=1 // pred_region
      _
    $region5: #{mlp_forward.1} parent=1 // pred_fallthru
      _
    // Predicated region
    $region6: #{mlp_forward.1} parent=1 // pred_check
      _
    $region7: #{mlp_forward.1} parent=1 // pred_check_branch
      %12 = sbr.rel (0) target = $region9
    $region8: #{mlp_forward.1} parent=1 // pred_region
      _
    $region9: #{mlp_forward.1} parent=1 // pred_fallthru
      _
    // Predicated region
    $region10: #{mlp_forward.1} parent=1 // pred_check
      _
    $region11: #{mlp_forward.1} parent=1 // pred_check_branch
      %14 = sbr.rel (0) target = $region13
    $region12: #{mlp_forward.1} parent=1 // pred_region
      _
    $region13: #{mlp_forward.1} parent=1 // pred_fallthru
      _
    %v15 = vld [vmem:[%s1] sm:$0xff]
    %v16 = vld [vmem:[%s1 + $0x8] sm:$0xff]
    %v17 = vld [vmem:[%s1 + $0x10] sm:$0xff]
    %v18 = vld [vmem:[%s1 + $0x18] sm:$0xff]
    %v19 = vld [vmem:[%s2] sm:$0xff]
    %v20 = vld [vmem:[%s2 + $0x8] sm:$0xff]
    %v21 = vld [vmem:[%s2 + $0x10] sm:$0xff]
    %v22 = vld [vmem:[%s2 + $0x18] sm:$0xff]
    %v23 = vld [vmem:[%s0] sm:$0xff]
    %25 = vset.pattern.permute.xlu0 0
    %26 = vperm.xlu0 %25, %v19
    %v27 = vpop.permute.xlu0 %26
    %30 = vset.pattern.permute.xlu0 0
    %31 = vperm.xlu0 %30, %v20
    %v32 = vpop.permute.xlu0 %31
    %35 = vset.pattern.permute.xlu0 0
    %36 = vperm.xlu0 %35, %v21
    %v37 = vpop.permute.xlu0 %36
    %40 = vset.pattern.permute.xlu0 0
    %41 = vperm.xlu0 %40, %v22
    %v42 = vpop.permute.xlu0 %41
    %vm44 = vcmask 130048
    %v46 = vsel %vm44, %v15, 0
    %v49 = vsel %vm44, %v16, 0
    %v52 = vsel %vm44, %v17, 0
    %v55 = vsel %vm44, %v18, 0
    %v58 = vsel %vm44, %v23, 0
    %60 = vmatpush.xpose.msra.mxu0 0.0
    %61 = vmatpush.xpose.msra.mxu0 0.0
    %62 = vmatpush.xpose.msra.mxu0 0.0
    %63 = vmatpush.xpose.msra.mxu0 0.0
    %64 = vmatpush.xpose.msra.mxu0 0.0
    %65 = vmatpush.xpose.msra.mxu0 0.0
    %66 = vmatpush.xpose.msra.mxu0 0.0
    %67 = vmatpush.xpose.msra.mxu0 0.0
    %68 = vmatpush.xpose.msra.mxu0 0.0
    %69 = vmatpush.xpose.msra.mxu0 0.0
    %70 = vmatpush.xpose.msra.mxu0 0.0
    %71 = vmatpush.xpose.msra.mxu0 0.0
    %72 = vmatpush.xpose.msra.mxu0 0.0
    %73 = vmatpush.xpose.msra.mxu0 0.0
    %74 = vmatpush.xpose.msra.mxu0 0.0
    %75 = vmatpush.xpose.msra.mxu0 %v58
    %76 = vmatmul.f32.gmra.mxu0 %v46
    %v77 = vpop.f32.mrf.mxu0
    %v78 = vadd.f32 %v27, %v77
    %79 = vmatmul.f32.gmra.mxu0 %v49
    %v80 = vpop.f32.mrf.mxu0
    %v81 = vadd.f32 %v32, %v80
    %82 = vmatmul.f32.gmra.mxu0 %v52
    %v83 = vpop.f32.mrf.mxu0
    %v84 = vadd.f32 %v37, %v83
    %85 = vmatmul.f32.gmra.mxu0 %v55
    %v86 = vpop.f32.mrf.mxu0
    %v87 = vadd.f32 %v42, %v86
    %88 = vdwg.mxu0
    %v89 = vmax.f32 %v78, 0.0
    %v90 = vmax.f32 %v81, 0.0
    %v91 = vmax.f32 %v84, 0.0
    %v92 = vmax.f32 %v87, 0.0
    %v93 = vld [vmem:[%s2 + $0x60] sm:$0xff]
    %v94 = vld [vmem:[%s2 + $0x68] sm:$0xff]
    %v95 = vld [vmem:[%s2 + $0x70] sm:$0xff]
    %v96 = vld [vmem:[%s2 + $0x78] sm:$0xff]
    %v97 = vld [vmem:[%s2 + $0xc0] sm:$0xff]
    %v98 = vld [vmem:[%s2 + $0xc8] sm:$0xff]
    %v99 = vld [vmem:[%s2 + $0xd0] sm:$0xff]
    %v100 = vld [vmem:[%s2 + $0xd8] sm:$0xff]
    %vm101 = vcmask 64512
    %v102 = vsel %vm101, %v89, 0.0
    %103 = vadd.xlane.f32.xlu0 %v102
    %v104 = vpop.xlane.xlu0 %103
    %v105 = vsel %vm101, %v90, 0.0
    %106 = vadd.xlane.f32.xlu0 %v105
    %v107 = vpop.xlane.xlu0 %106
    %v108 = vsel %vm101, %v91, 0.0
    %109 = vadd.xlane.f32.xlu0 %v108
    %v110 = vpop.xlane.xlu0 %109
    %v111 = vsel %vm101, %v92, 0.0
    %112 = vadd.xlane.f32.xlu0 %v111
    %v113 = vpop.xlane.xlu0 %112
    %v114 = vrcp.pop 8.0
    %v115 = vmul.f32 8.0, %v114
    %v116 = vsub.f32 1.0, %v115
    %v117 = vmul.f32 %v114, %v116
    %v118 = vadd.f32 %v114, %v117
    %vm119 = vweird.f32 %v114
    %v120 = vsel %vm119, %v114, %v118
    %v121 = vmul.f32 %v104, %v120
    %v122 = vmul.f32 %v107, %v120
    %v123 = vmul.f32 %v110, %v120
    %v124 = vmul.f32 %v113, %v120
    %v125 = vmul.f32 %v89, %v89
    %v126 = vmul.f32 %v90, %v90
    %v127 = vmul.f32 %v91, %v91
    %v128 = vmul.f32 %v92, %v92
    %v129 = vsel %vm101, %v125, 0.0
    %130 = vadd.xlane.f32.xlu0 %v129
    %v131 = vpop.xlane.xlu0 %130
    %v132 = vsel %vm101, %v126, 0.0
    %133 = vadd.xlane.f32.xlu0 %v132
    %v134 = vpop.xlane.xlu0 %133
    %v135 = vsel %vm101, %v127, 0.0
    %136 = vadd.xlane.f32.xlu0 %v135
    %v137 = vpop.xlane.xlu0 %136
    %v138 = vsel %vm101, %v128, 0.0
    %139 = vadd.xlane.f32.xlu0 %v138
    %v140 = vpop.xlane.xlu0 %139
    %v141 = vmul.f32 %v131, %v120
    %v142 = vmul.f32 %v134, %v120
    %v143 = vmul.f32 %v137, %v120
    %v144 = vmul.f32 %v140, %v120
    %v145 = vmul.f32 %v121, %v121
    %v146 = vmul.f32 %v122, %v122
    %v147 = vmul.f32 %v123, %v123
    %v148 = vmul.f32 %v124, %v124
    %v149 = vsub.f32 %v141, %v145
    %v150 = vsub.f32 %v142, %v146
    %v151 = vsub.f32 %v143, %v147
    %v152 = vsub.f32 %v144, %v148
    %v153 = vmax.f32 %v149, 0.0
    %v154 = vmax.f32 %v150, 0.0
    %v155 = vmax.f32 %v151, 0.0
    %v156 = vmax.f32 %v152, 0.0
    %v157 = vadd.f32 %v153, 1e-05
    %v158 = vadd.f32 %v154, 1e-05
    %v159 = vadd.f32 %v155, 1e-05
    %v160 = vadd.f32 %v156, 1e-05
    %v161 = vrsqrt.pop %v157
    %v162 = vmul.f32 %v161, %v157
    %v163 = vmul.f32 %v162, %v161
    %v164 = vmul.f32 0.5, %v163
    %v165 = vsub.f32 1.5, %v164
    %v166 = vmul.f32 %v161, %v165
    %vm167 = vweird.f32 %v157
    %vm168 = vweird.f32 %v161
    %vm169 = vmor %vm167, %vm168
    %v170 = vsel %vm169, %v161, %v166
    %v171 = vrsqrt.pop %v158
    %v172 = vmul.f32 %v171, %v158
    %v173 = vmul.f32 %v172, %v171
    %v174 = vmul.f32 0.5, %v173
    %v175 = vsub.f32 1.5, %v174
    %v176 = vmul.f32 %v171, %v175
    %vm177 = vweird.f32 %v158
    %vm178 = vweird.f32 %v171
    %vm179 = vmor %vm177, %vm178
    %v180 = vsel %vm179, %v171, %v176
    %v181 = vrsqrt.pop %v159
    %v182 = vmul.f32 %v181, %v159
    %v183 = vmul.f32 %v182, %v181
    %v184 = vmul.f32 0.5, %v183
    %v185 = vsub.f32 1.5, %v184
    %v186 = vmul.f32 %v181, %v185
    %vm187 = vweird.f32 %v159
    %vm188 = vweird.f32 %v181
    %vm189 = vmor %vm187, %vm188
    %v190 = vsel %vm189, %v181, %v186
    %v191 = vrsqrt.pop %v160
    %v192 = vmul.f32 %v191, %v160
    %v193 = vmul.f32 %v192, %v191
    %v194 = vmul.f32 0.5, %v193
    %v195 = vsub.f32 1.5, %v194
    %v196 = vmul.f32 %v191, %v195
    %vm197 = vweird.f32 %v160
    %vm198 = vweird.f32 %v191
    %vm199 = vmor %vm197, %vm198
    %v200 = vsel %vm199, %v191, %v196
    %v201 = vmul.f32 %v93, %v170
    %v202 = vmul.f32 %v94, %v180
    %v203 = vmul.f32 %v95, %v190
    %v204 = vmul.f32 %v96, %v200
    %v205 = vmul.f32 %v121, %v201
    %v206 = vmul.f32 %v122, %v202
    %v207 = vmul.f32 %v123, %v203
    %v208 = vmul.f32 %v124, %v204
    %v209 = vsub.f32 %v97, %v205
    %v210 = vsub.f32 %v98, %v206
    %v211 = vsub.f32 %v99, %v207
    %v212 = vsub.f32 %v100, %v208
    %214 = vset.pattern.permute.xlu0 0
    %215 = vperm.xlu0 %214, %v201
    %v216 = vpop.permute.xlu0 %215
    %219 = vset.pattern.permute.xlu0 0
    %220 = vperm.xlu0 %219, %v202
    %v221 = vpop.permute.xlu0 %220
    %224 = vset.pattern.permute.xlu0 0
    %225 = vperm.xlu0 %224, %v203
    %v226 = vpop.permute.xlu0 %225
    %229 = vset.pattern.permute.xlu0 0
    %230 = vperm.xlu0 %229, %v204
    %v231 = vpop.permute.xlu0 %230
    %v233 = vmul.f32 %v89, %v216
    %v234 = vmul.f32 %v90, %v221
    %v235 = vmul.f32 %v91, %v226
    %v236 = vmul.f32 %v92, %v231
    %238 = vset.pattern.permute.xlu0 0
    %239 = vperm.xlu0 %238, %v209
    %v240 = vpop.permute.xlu0 %239
    %243 = vset.pattern.permute.xlu0 0
    %244 = vperm.xlu0 %243, %v210
    %v245 = vpop.permute.xlu0 %244
    %248 = vset.pattern.permute.xlu0 0
    %249 = vperm.xlu0 %248, %v211
    %v250 = vpop.permute.xlu0 %249
    %253 = vset.pattern.permute.xlu0 0
    %254 = vperm.xlu0 %253, %v212
    %v255 = vpop.permute.xlu0 %254
    %v257 = vadd.f32 %v233, %v240
    %v258 = vadd.f32 %v234, %v245
    %v259 = vadd.f32 %v235, %v250
    %v260 = vadd.f32 %v236, %v255
    %v261 = vld [vmem:[%s1 + $0x20] sm:$0xff]
    %v262 = vld [vmem:[%s1 + $0x28] sm:$0xff]
    %v263 = vld [vmem:[%s2 + $0x20] sm:$0xff]
    %v264 = vld [vmem:[%s2 + $0x28] sm:$0xff]
    %266 = vset.pattern.permute.xlu0 0
    %267 = vperm.xlu0 %266, %v263
    %v268 = vpop.permute.xlu0 %267
    %271 = vset.pattern.permute.xlu0 0
    %272 = vperm.xlu0 %271, %v264
    %v273 = vpop.permute.xlu0 %272
    %vm275 = vcmask 261120
    %v277 = vsel %vm275, %v261, 0
    %v280 = vsel %vm275, %v262, 0
    %282 = vmatpush.msra.mxu0 0.0
    %283 = vmatpush.msra.mxu0 0.0
    %284 = vmatpush.msra.mxu0 0.0
    %285 = vmatpush.msra.mxu0 0.0
    %286 = vmatpush.msra.mxu0 0.0
    %287 = vmatpush.msra.mxu0 0.0
    %288 = vmatpush.msra.mxu0 0.0
    %289 = vmatpush.msra.mxu0 0.0
    %290 = vmatpush.msra.mxu0 0.0
    %291 = vmatpush.msra.mxu0 0.0
    %292 = vmatpush.msra.mxu0 0.0
    %293 = vmatpush.msra.mxu0 0.0
    %294 = vmatpush.msra.mxu0 %v260
    %295 = vmatpush.msra.mxu0 %v259
    %296 = vmatpush.msra.mxu0 %v258
    %297 = vmatpush.msra.mxu0 %v257
    %298 = vmatmul.f32.gmra.mxu0 %v277
    %v299 = vpop.f32.mrf.mxu0
    %v300 = vadd.f32 %v268, %v299
    %301 = vmatmul.f32.gmra.mxu0 %v280
    %v302 = vpop.f32.mrf.mxu0
    %v303 = vadd.f32 %v273, %v302
    %304 = vdwg.mxu0
    %v305 = vmax.f32 %v300, 0.0
    %v306 = vmax.f32 %v303, 0.0
    %v307 = vld [vmem:[%s2 + $0x80] sm:$0xff]
    %v308 = vld [vmem:[%s2 + $0x88] sm:$0xff]
    %v309 = vld [vmem:[%s2 + $0xe0] sm:$0xff]
    %v310 = vld [vmem:[%s2 + $0xe8] sm:$0xff]
    %v311 = vsel %vm101, %v305, 0.0
    %312 = vadd.xlane.f32.xlu0 %v311
    %v313 = vpop.xlane.xlu0 %312
    %v314 = vsel %vm101, %v306, 0.0
    %315 = vadd.xlane.f32.xlu0 %v314
    %v316 = vpop.xlane.xlu0 %315
    %v317 = vmul.f32 %v313, %v120
    %v318 = vmul.f32 %v316, %v120
    %v319 = vmul.f32 %v305, %v305
    %v320 = vmul.f32 %v306, %v306
    %v321 = vsel %vm101, %v319, 0.0
    %322 = vadd.xlane.f32.xlu0 %v321
    %v323 = vpop.xlane.xlu0 %322
    %v324 = vsel %vm101, %v320, 0.0
    %325 = vadd.xlane.f32.xlu0 %v324
    %v326 = vpop.xlane.xlu0 %325
    %v327 = vmul.f32 %v323, %v120
    %v328 = vmul.f32 %v326, %v120
    %v329 = vmul.f32 %v317, %v317
    %v330 = vmul.f32 %v318, %v318
    %v331 = vsub.f32 %v327, %v329
    %v332 = vsub.f32 %v328, %v330
    %v333 = vmax.f32 %v331, 0.0
    %v334 = vmax.f32 %v332, 0.0
    %v335 = vadd.f32 %v333, 1e-05
    %v336 = vadd.f32 %v334, 1e-05
    %v337 = vrsqrt.pop %v335
    %v338 = vmul.f32 %v337, %v335
    %v339 = vmul.f32 %v338, %v337
    %v340 = vmul.f32 0.5, %v339
    %v341 = vsub.f32 1.5, %v340
    %v342 = vmul.f32 %v337, %v341
    %vm343 = vweird.f32 %v335
    %vm344 = vweird.f32 %v337
    %vm345 = vmor %vm343, %vm344
    %v346 = vsel %vm345, %v337, %v342
    %v347 = vrsqrt.pop %v336
    %v348 = vmul.f32 %v347, %v336
    %v349 = vmul.f32 %v348, %v347
    %v350 = vmul.f32 0.5, %v349
    %v351 = vsub.f32 1.5, %v350
    %v352 = vmul.f32 %v347, %v351
    %vm353 = vweird.f32 %v336
    %vm354 = vweird.f32 %v347
    %vm355 = vmor %vm353, %vm354
    %v356 = vsel %vm355, %v347, %v352
    %v357 = vmul.f32 %v307, %v346
    %v358 = vmul.f32 %v308, %v356
    %v359 = vmul.f32 %v317, %v357
    %v360 = vmul.f32 %v318, %v358
    %v361 = vsub.f32 %v309, %v359
    %v362 = vsub.f32 %v310, %v360
    %364 = vset.pattern.permute.xlu0 0
    %365 = vperm.xlu0 %364, %v357
    %v366 = vpop.permute.xlu0 %365
    %369 = vset.pattern.permute.xlu0 0
    %370 = vperm.xlu0 %369, %v358
    %v371 = vpop.permute.xlu0 %370
    %v373 = vmul.f32 %v305, %v366
    %v374 = vmul.f32 %v306, %v371
    %376 = vset.pattern.permute.xlu0 0
    %377 = vperm.xlu0 %376, %v361
    %v378 = vpop.permute.xlu0 %377
    %381 = vset.pattern.permute.xlu0 0
    %382 = vperm.xlu0 %381, %v362
    %v383 = vpop.permute.xlu0 %382
    %v385 = vadd.f32 %v373, %v378
    %v386 = vadd.f32 %v374, %v383
    %v387 = vld [vmem:[%s1 + $0x30] sm:$0xff]
    %v388 = vld [vmem:[%s1 + $0x38] sm:$0xff]
    %v389 = vld [vmem:[%s2 + $0x30] sm:$0xff]
    %v390 = vld [vmem:[%s2 + $0x38] sm:$0xff]
    %392 = vset.pattern.permute.xlu0 0
    %393 = vperm.xlu0 %392, %v389
    %v394 = vpop.permute.xlu0 %393
    %397 = vset.pattern.permute.xlu0 0
    %398 = vperm.xlu0 %397, %v390
    %v399 = vpop.permute.xlu0 %398
    %v402 = vsel %vm44, %v387, 0
    %v405 = vsel %vm44, %v388, 0
    %407 = vmatpush.msra.mxu0 0.0
    %408 = vmatpush.msra.mxu0 0.0
    %409 = vmatpush.msra.mxu0 0.0
    %410 = vmatpush.msra.mxu0 0.0
    %411 = vmatpush.msra.mxu0 0.0
    %412 = vmatpush.msra.mxu0 0.0
    %413 = vmatpush.msra.mxu0 0.0
    %414 = vmatpush.msra.mxu0 0.0
    %415 = vmatpush.msra.mxu0 0.0
    %416 = vmatpush.msra.mxu0 0.0
    %417 = vmatpush.msra.mxu0 0.0
    %418 = vmatpush.msra.mxu0 0.0
    %419 = vmatpush.msra.mxu0 0.0
    %420 = vmatpush.msra.mxu0 0.0
    %421 = vmatpush.msra.mxu0 %v386
    %422 = vmatpush.msra.mxu0 %v385
    %423 = vmatmul.f32.gmra.mxu0 %v402
    %v424 = vpop.f32.mrf.mxu0
    %v425 = vadd.f32 %v394, %v424
    %426 = vmatmul.f32.gmra.mxu0 %v405
    %v427 = vpop.f32.mrf.mxu0
    %v428 = vadd.f32 %v399, %v427
    %429 = vdwg.mxu0
    %v430 = vmax.f32 %v425, 0.0
    %v431 = vmax.f32 %v428, 0.0
    %v432 = vld [vmem:[%s2 + $0x90] sm:$0xff]
    %v433 = vld [vmem:[%s2 + $0x98] sm:$0xff]
    %v434 = vld [vmem:[%s2 + $0xf0] sm:$0xff]
    %v435 = vld [vmem:[%s2 + $0xf8] sm:$0xff]
    %v436 = vsel %vm101, %v430, 0.0
    %437 = vadd.xlane.f32.xlu0 %v436
    %v438 = vpop.xlane.xlu0 %437
    %v439 = vsel %vm101, %v431, 0.0
    %440 = vadd.xlane.f32.xlu0 %v439
    %v441 = vpop.xlane.xlu0 %440
    %v442 = vmul.f32 %v438, %v120
    %v443 = vmul.f32 %v441, %v120
    %v444 = vmul.f32 %v430, %v430
    %v445 = vmul.f32 %v431, %v431
    %v446 = vsel %vm101, %v444, 0.0
    %447 = vadd.xlane.f32.xlu0 %v446
    %v448 = vpop.xlane.xlu0 %447
    %v449 = vsel %vm101, %v445, 0.0
    %450 = vadd.xlane.f32.xlu0 %v449
    %v451 = vpop.xlane.xlu0 %450
    %v452 = vmul.f32 %v448, %v120
    %v453 = vmul.f32 %v451, %v120
    %v454 = vmul.f32 %v442, %v442
    %v455 = vmul.f32 %v443, %v443
    %v456 = vsub.f32 %v452, %v454
    %v457 = vsub.f32 %v453, %v455
    %v458 = vmax.f32 %v456, 0.0
    %v459 = vmax.f32 %v457, 0.0
    %v460 = vadd.f32 %v458, 1e-05
    %v461 = vadd.f32 %v459, 1e-05
    %v462 = vrsqrt.pop %v460
    %v463 = vmul.f32 %v462, %v460
    %v464 = vmul.f32 %v463, %v462
    %v465 = vmul.f32 0.5, %v464
    %v466 = vsub.f32 1.5, %v465
    %v467 = vmul.f32 %v462, %v466
    %vm468 = vweird.f32 %v460
    %vm469 = vweird.f32 %v462
    %vm470 = vmor %vm468, %vm469
    %v471 = vsel %vm470, %v462, %v467
    %v472 = vrsqrt.pop %v461
    %v473 = vmul.f32 %v472, %v461
    %v474 = vmul.f32 %v473, %v472
    %v475 = vmul.f32 0.5, %v474
    %v476 = vsub.f32 1.5, %v475
    %v477 = vmul.f32 %v472, %v476
    %vm478 = vweird.f32 %v461
    %vm479 = vweird.f32 %v472
    %vm480 = vmor %vm478, %vm479
    %v481 = vsel %vm480, %v472, %v477
    %v482 = vmul.f32 %v432, %v471
    %v483 = vmul.f32 %v433, %v481
    %v484 = vmul.f32 %v442, %v482
    %v485 = vmul.f32 %v443, %v483
    %v486 = vsub.f32 %v434, %v484
    %v487 = vsub.f32 %v435, %v485
    %489 = vset.pattern.permute.xlu0 0
    %490 = vperm.xlu0 %489, %v482
    %v491 = vpop.permute.xlu0 %490
    %494 = vset.pattern.permute.xlu0 0
    %495 = vperm.xlu0 %494, %v483
    %v496 = vpop.permute.xlu0 %495
    %v498 = vmul.f32 %v430, %v491
    %v499 = vmul.f32 %v431, %v496
    %501 = vset.pattern.permute.xlu0 0
    %502 = vperm.xlu0 %501, %v486
    %v503 = vpop.permute.xlu0 %502
    %506 = vset.pattern.permute.xlu0 0
    %507 = vperm.xlu0 %506, %v487
    %v508 = vpop.permute.xlu0 %507
    %v510 = vadd.f32 %v498, %v503
    %v511 = vadd.f32 %v499, %v508
    %v512 = vld [vmem:[%s1 + $0x40] sm:$0xff]
    %v513 = vld [vmem:[%s1 + $0x48] sm:$0xff]
    %v514 = vld [vmem:[%s2 + $0x40] sm:$0xff]
    %v515 = vld [vmem:[%s2 + $0x48] sm:$0xff]
    %517 = vset.pattern.permute.xlu0 0
    %518 = vperm.xlu0 %517, %v514
    %v519 = vpop.permute.xlu0 %518
    %522 = vset.pattern.permute.xlu0 0
    %523 = vperm.xlu0 %522, %v515
    %v524 = vpop.permute.xlu0 %523
    %v527 = vsel %vm44, %v512, 0
    %v530 = vsel %vm44, %v513, 0
    %532 = vmatpush.msra.mxu0 0.0
    %533 = vmatpush.msra.mxu0 0.0
    %534 = vmatpush.msra.mxu0 0.0
    %535 = vmatpush.msra.mxu0 0.0
    %536 = vmatpush.msra.mxu0 0.0
    %537 = vmatpush.msra.mxu0 0.0
    %538 = vmatpush.msra.mxu0 0.0
    %539 = vmatpush.msra.mxu0 0.0
    %540 = vmatpush.msra.mxu0 0.0
    %541 = vmatpush.msra.mxu0 0.0
    %542 = vmatpush.msra.mxu0 0.0
    %543 = vmatpush.msra.mxu0 0.0
    %544 = vmatpush.msra.mxu0 0.0
    %545 = vmatpush.msra.mxu0 0.0
    %546 = vmatpush.msra.mxu0 %v511
    %547 = vmatpush.msra.mxu0 %v510
    %548 = vmatmul.f32.gmra.mxu0 %v527
    %v549 = vpop.f32.mrf.mxu0
    %v550 = vadd.f32 %v519, %v549
    %551 = vmatmul.f32.gmra.mxu0 %v530
    %v552 = vpop.f32.mrf.mxu0
    %v553 = vadd.f32 %v524, %v552
    %554 = vdwg.mxu0
    %v555 = vmax.f32 %v550, 0.0
    %v556 = vmax.f32 %v553, 0.0
    %v557 = vld [vmem:[%s2 + $0xa0] sm:$0xff]
    %v558 = vld [vmem:[%s2 + $0xa8] sm:$0xff]
    %v559 = vld [vmem:[%s2 + $0x100] sm:$0xff]
    %v560 = vld [vmem:[%s2 + $0x108] sm:$0xff]
    %v561 = vsel %vm101, %v555, 0.0
    %562 = vadd.xlane.f32.xlu0 %v561
    %v563 = vpop.xlane.xlu0 %562
    %v564 = vsel %vm101, %v556, 0.0
    %565 = vadd.xlane.f32.xlu0 %v564
    %v566 = vpop.xlane.xlu0 %565
    %v567 = vmul.f32 %v563, %v120
    %v568 = vmul.f32 %v566, %v120
    %v569 = vmul.f32 %v555, %v555
    %v570 = vmul.f32 %v556, %v556
    %v571 = vsel %vm101, %v569, 0.0
    %572 = vadd.xlane.f32.xlu0 %v571
    %v573 = vpop.xlane.xlu0 %572
    %v574 = vsel %vm101, %v570, 0.0
    %575 = vadd.xlane.f32.xlu0 %v574
    %v576 = vpop.xlane.xlu0 %575
    %v577 = vmul.f32 %v573, %v120
    %v578 = vmul.f32 %v576, %v120
    %v579 = vmul.f32 %v567, %v567
    %v580 = vmul.f32 %v568, %v568
    %v581 = vsub.f32 %v577, %v579
    %v582 = vsub.f32 %v578, %v580
    %v583 = vmax.f32 %v581, 0.0
    %v584 = vmax.f32 %v582, 0.0
    %v585 = vadd.f32 %v583, 1e-05
    %v586 = vadd.f32 %v584, 1e-05
    %v587 = vrsqrt.pop %v585
    %v588 = vmul.f32 %v587, %v585
    %v589 = vmul.f32 %v588, %v587
    %v590 = vmul.f32 0.5, %v589
    %v591 = vsub.f32 1.5, %v590
    %v592 = vmul.f32 %v587, %v591
    %vm593 = vweird.f32 %v585
    %vm594 = vweird.f32 %v587
    %vm595 = vmor %vm593, %vm594
    %v596 = vsel %vm595, %v587, %v592
    %v597 = vrsqrt.pop %v586
    %v598 = vmul.f32 %v597, %v586
    %v599 = vmul.f32 %v598, %v597
    %v600 = vmul.f32 0.5, %v599
    %v601 = vsub.f32 1.5, %v600
    %v602 = vmul.f32 %v597, %v601
    %vm603 = vweird.f32 %v586
    %vm604 = vweird.f32 %v597
    %vm605 = vmor %vm603, %vm604
    %v606 = vsel %vm605, %v597, %v602
    %v607 = vmul.f32 %v557, %v596
    %v608 = vmul.f32 %v558, %v606
    %v609 = vmul.f32 %v567, %v607
    %v610 = vmul.f32 %v568, %v608
    %v611 = vsub.f32 %v559, %v609
    %v612 = vsub.f32 %v560, %v610
    %614 = vset.pattern.permute.xlu0 0
    %615 = vperm.xlu0 %614, %v607
    %v616 = vpop.permute.xlu0 %615
    %619 = vset.pattern.permute.xlu0 0
    %620 = vperm.xlu0 %619, %v608
    %v621 = vpop.permute.xlu0 %620
    %v623 = vmul.f32 %v555, %v616
    %v624 = vmul.f32 %v556, %v621
    %626 = vset.pattern.permute.xlu0 0
    %627 = vperm.xlu0 %626, %v611
    %v628 = vpop.permute.xlu0 %627
    %631 = vset.pattern.permute.xlu0 0
    %632 = vperm.xlu0 %631, %v612
    %v633 = vpop.permute.xlu0 %632
    %v635 = vadd.f32 %v623, %v628
    %v636 = vadd.f32 %v624, %v633
    %v637 = vld [vmem:[%s1 + $0x50] sm:$0xff]
    %v638 = vld [vmem:[%s1 + $0x58] sm:$0xff]
    %v639 = vld [vmem:[%s2 + $0x50] sm:$0xff]
    %v640 = vld [vmem:[%s2 + $0x58] sm:$0xff]
    %642 = vset.pattern.permute.xlu0 0
    %643 = vperm.xlu0 %642, %v639
    %v644 = vpop.permute.xlu0 %643
    %647 = vset.pattern.permute.xlu0 0
    %648 = vperm.xlu0 %647, %v640
    %v649 = vpop.permute.xlu0 %648
    %v651 = vsel %vm44, %v637, 0
    %v654 = vsel %vm44, %v638, 0
    %656 = vmatpush.msra.mxu0 0.0
    %657 = vmatpush.msra.mxu0 0.0
    %658 = vmatpush.msra.mxu0 0.0
    %659 = vmatpush.msra.mxu0 0.0
    %660 = vmatpush.msra.mxu0 0.0
    %661 = vmatpush.msra.mxu0 0.0
    %662 = vmatpush.msra.mxu0 0.0
    %663 = vmatpush.msra.mxu0 0.0
    %664 = vmatpush.msra.mxu0 0.0
    %665 = vmatpush.msra.mxu0 0.0
    %666 = vmatpush.msra.mxu0 0.0
    %667 = vmatpush.msra.mxu0 0.0
    %668 = vmatpush.msra.mxu0 0.0
    %669 = vmatpush.msra.mxu0 0.0
    %670 = vmatpush.msra.mxu0 %v636
    %671 = vmatpush.msra.mxu0 %v635
    %672 = vmatmul.f32.gmra.mxu0 %v651
    %v673 = vpop.f32.mrf.mxu0
    %v674 = vadd.f32 %v644, %v673
    %675 = vmatmul.f32.gmra.mxu0 %v654
    %v676 = vpop.f32.mrf.mxu0
    %677 = vdwg.mxu0
    %v678 = vsub.f32 0.0, %v674
    %v679 = vmul.f32 %v678, 1.442695
    %v680 = vpow.pop %v679
    %v681 = vadd.f32 %v680, 1.0
    %v682 = vrcp.pop %v681
    %vm683 = vcmask 57344
    %684 = vst.msk [vmem:[#allocation2] sm:$0x1] %vm683, %v682
    // Predicated region
    $region14: #{mlp_forward.1} parent=1 // pred_check
      _
    $region15: #{mlp_forward.1} parent=1 // pred_check_branch
      %686 = sbr.rel (0) target = $region17
    $region16: #{mlp_forward.1} parent=1 // pred_region
      %688 = vsyncadd [#allocation3], 0
      %s690 = sshll.u32 [#allocation2], 4
      %s691 = int_to_ptr.vmem [resolvable:$true] %s690
      %s692 = sshll.u32 %s3, 4
      %s693 = int_to_ptr.hbm [resolvable:$true] %s692
      %695 = dma.vmem_to_hbm [thread:$0]  %s691, 16, %s693, [#allocation3]
    $region17: #{mlp_forward.1} parent=1 // pred_fallthru
      _
    // Predicated region
    $region18: #{mlp_forward.1} parent=1 // pred_check
      _
    $region19: #{mlp_forward.1} parent=1 // pred_check_branch
      %697 = sbr.rel (0) target = $region21
    $region20: #{mlp_forward.1} parent=1 // pred_region
      %699 = dma.done [#allocation3], 16
    $region21: #{mlp_forward.1} parent=1 // pred_fallthru
      _
    %700 = vsyncpa [#allocation3], 1

</llo_original>
